<compile_context>
chip_gen: v7x
topology: tpu7x:2x2x1
jax: 0.10.0
libtpu: 0.0.40
codegen_flags: <defaults>
</compile_context>

<pallas_src>
import functools

import jax
import jax.numpy as jnp
from jax.experimental import pallas as pl
from jax.experimental.pallas import tpu as pltpu

_ROUND_MAGIC = 1.5 * (2.0 ** 23)  # (v + M) - M == round-to-nearest-even for |v| < 2**22

# name -> (mantissa bits, min quantum exponent (subnormal step = 2**min_qexp), saturation)
_FP8_FORMATS = {
    "e4m3": (3, -9, 240.0),      # module's E4M3_AMAX (Gaudi2 convention, not OCP's 448)
    "e5m2": (2, -16, 57344.0),   # module's E5M2_AMAX
}

# Tile targets (sweepable). 512-wide output tiles double A/B reuse vs 256 and still
# keep per-step VMEM (~5 MiB with double-buffering) far below the scoped default.
_TM, _TN, _TK = 512, 512, 512


def _round_up(x, m):
    return ((x + m - 1) // m) * m


def _tile(dim, target, align):
    """Largest tile <= target that is a multiple of `align` (small dims covered exactly)."""
    return min(target, _round_up(dim, align))


def _fp8_roundtrip(x, mant_bits, min_qexp, max_val):
    """Round f32 `x` onto the fp8 grid (round-to-nearest-even, saturating), return f32."""
    bits = pltpu.bitcast(x, jnp.int32)
    exp = ((bits >> 23) & 0xFF) - 127                  # unbiased f32 exponent
    qexp = jnp.maximum(exp - mant_bits, min_qexp)      # exponent of the fp8 quantum (pow2)
    quantum = pltpu.bitcast((qexp + 127) << 23, jnp.float32)
    inv_quantum = pltpu.bitcast((127 - qexp) << 23, jnp.float32)
    v = x * inv_quantum                                # exact (power-of-two scaling)
    r = (v + _ROUND_MAGIC) - _ROUND_MAGIC              # round half to even
    y = r * quantum
    return jnp.clip(y, -max_val, max_val)              # saturating cast


# ---------------------------------------------------------------------------
# Kernel 1: gridded per-tensor amax reduction (observer emulation, setup-time only)
# ---------------------------------------------------------------------------
def _amax_kernel(x_ref, amax_ref, acc_ref):
    i, j = pl.program_id(0), pl.program_id(1)

    @pl.when((i == 0) & (j == 0))
    def _init():
        acc_ref[...] = jnp.zeros_like(acc_ref)

    ax = jnp.abs(x_ref[...].astype(jnp.float32))
    tile_max = jnp.max(jnp.max(ax, axis=1, keepdims=True), axis=0, keepdims=True)
    acc_ref[...] = jnp.maximum(acc_ref[...], tile_max)

    @pl.when((i == pl.num_programs(0) - 1) & (j == pl.num_programs(1) - 1))
    def _finalize():
        amax_ref[...] = acc_ref[...]


def _tensor_amax(x2d):
    """Per-tensor max(|x|) of a 2-D array of any size (tiles + VMEM accumulator)."""
    r, c = x2d.shape
    tr = _tile(r, 256, 16)
    tc = _tile(c, 512, 128)
    rp, cp = _round_up(r, tr), _round_up(c, tc)
    x_pad = jnp.pad(x2d, ((0, rp - r), (0, cp - c)))   # native dtype; cast in-kernel
    amax = pl.pallas_call(
        _amax_kernel,
        out_shape=jax.ShapeDtypeStruct((1, 1), jnp.float32),
        grid=(rp // tr, cp // tc),
        in_specs=[pl.BlockSpec((tr, tc), lambda i, j: (i, j))],
        out_specs=pl.BlockSpec((1, 1), lambda i, j: (0, 0)),
        scratch_shapes=[pltpu.VMEM((1, 1), jnp.float32)],
        compiler_params=pltpu.CompilerParams(
            dimension_semantics=("arbitrary", "arbitrary")),
    )(x_pad)
    return amax.reshape(1)


# ---------------------------------------------------------------------------
# Kernel 2: one-shot fp8 quantization pre-pass (stores fp8 grid values as bf16)
# ---------------------------------------------------------------------------
def _quantize_kernel(inv_scale_ref, x_ref, q_ref, *, mant_bits, min_qexp, max_val):
    x = x_ref[...].astype(jnp.float32) * inv_scale_ref[0]
    q = _fp8_roundtrip(x, mant_bits, min_qexp, max_val)
    # fp8 grid values (<=3 mantissa bits, e4m3/e5m2 exponent range) are exact in bf16.
    q_ref[...] = q.astype(jnp.bfloat16)


def _quantize_to_fp8_bf16(x_pad, inv_scale, tile, fp8_format):
    mant_bits, min_qexp, max_val = _FP8_FORMATS[fp8_format]
    r, c = x_pad.shape
    tr, tc = tile
    kernel = functools.partial(
        _quantize_kernel, mant_bits=mant_bits, min_qexp=min_qexp, max_val=max_val)
    return pl.pallas_call(
        kernel,
        out_shape=jax.ShapeDtypeStruct((r, c), jnp.bfloat16),
        grid=(r // tr, c // tc),
        in_specs=[
            pl.BlockSpec(memory_space=pltpu.MemorySpace.SMEM),   # inv_scale (1,)
            pl.BlockSpec((tr, tc), lambda i, j: (i, j)),
        ],
        out_specs=pl.BlockSpec((tr, tc), lambda i, j: (i, j)),
        compiler_params=pltpu.CompilerParams(
            dimension_semantics=("parallel", "parallel")),
    )(inv_scale, x_pad)


# ---------------------------------------------------------------------------
# Kernel 3: tiled bf16 GEMM (quantized operands), f32 accum, fused dequant + bias
# ---------------------------------------------------------------------------
def _fp8_gemm_kernel(scale_ref, a_ref, b_ref, bias_ref, o_ref, acc_ref):
    k = pl.program_id(2)

    @pl.when(k == 0)
    def _init():
        acc_ref[...] = jnp.zeros_like(acc_ref)

    # bf16 x bf16 -> f32: native MXU rate on all generations.
    acc_ref[...] += jnp.dot(a_ref[...], b_ref[...], preferred_element_type=jnp.float32)

    @pl.when(k == pl.num_programs(2) - 1)
    def _finalize():
        # fp8_gemm_v2: dequant by input_scale*weight_scale (pre-combined in SMEM) + bias
        o_ref[...] = (acc_ref[...] * scale_ref[0] + bias_ref[...]).astype(o_ref.dtype)


def _fp8_gemm(a_q, w_q, bias_pad_f32, out_scale, tm, tn, tk, out_dtype):
    mp, kp = a_q.shape
    _, np_ = w_q.shape
    bias2d = bias_pad_f32.reshape(1, np_)
    return pl.pallas_call(
        _fp8_gemm_kernel,
        out_shape=jax.ShapeDtypeStruct((mp, np_), out_dtype),
        grid=(mp // tm, np_ // tn, kp // tk),
        in_specs=[
            pl.BlockSpec(memory_space=pltpu.MemorySpace.SMEM),       # combined scale (1,)
            pl.BlockSpec((tm, tk), lambda i, j, k: (i, k)),          # quantized input tile
            pl.BlockSpec((tk, tn), lambda i, j, k: (k, j)),          # quantized weight tile
            pl.BlockSpec((1, tn), lambda i, j, k: (0, j)),           # bias tile
        ],
        out_specs=pl.BlockSpec((tm, tn), lambda i, j, k: (i, j)),
        scratch_shapes=[pltpu.VMEM((tm, tn), jnp.float32)],
        compiler_params=pltpu.CompilerParams(
            dimension_semantics=("parallel", "parallel", "arbitrary")),
    )(out_scale, a_q, w_q, bias2d)


# ---------------------------------------------------------------------------
# Module-level wrappers: from_float (setup) + forward
# ---------------------------------------------------------------------------
def fp8_linear_from_float(weight, bias, calib_input, fp8_format="e4m3"):
    """Emulates FP8Linear.from_float: quantize weight once, store static scales.

    weight: (out_features, in_features) high precision (nn.Linear layout).
    bias:   (out_features,) or None.
    calib_input: sample activations used to set input_scale (stands in for the
                 observer-provided `org_module.scale`; FP8Linear defaults to 1.0).
    """
    _, _, max_val = _FP8_FORMATS[fp8_format]
    out_features, in_features = weight.shape
    out_dtype = weight.dtype                      # module: out_dtype = org weight dtype

    w_t = weight.T.astype(jnp.float32)            # module stores weight.T -> (K, N)
    k_dim, n_dim = w_t.shape
    tk = _tile(k_dim, _TK, 128)
    tn = _tile(n_dim, _TN, 128)
    kp, np_ = _round_up(k_dim, tk), _round_up(n_dim, tn)

    # weight observer -> scale = amax / FP8_MAX (guarded against all-zero tensors)
    w_amax = _tensor_amax(w_t)
    weight_scale = jnp.maximum(w_amax / max_val, jnp.float32(1e-30))
    weight_scale_inv = (1.0 / weight_scale).astype(jnp.float32)

    w_pad = jnp.pad(w_t, ((0, kp - k_dim), (0, np_ - n_dim)))
    weight_q = _quantize_to_fp8_bf16(w_pad, weight_scale_inv, (tk, tn), fp8_format)

    # input scale from calibration (emulates org_module.scale); guarded against zeros
    x2d = calib_input.reshape(-1, in_features)
    in_amax = _tensor_amax(x2d)
    input_scale = jnp.maximum(in_amax / max_val, jnp.float32(1e-30))
    input_scale_inv = (1.0 / input_scale).astype(jnp.float32)

    if bias is not None:
        bias_pad = jnp.pad(bias.astype(jnp.float32), (0, np_ - n_dim))
    else:
        bias_pad = jnp.zeros((np_,), jnp.float32)

    return dict(
        in_features=in_features, out_features=out_features, out_dtype=out_dtype,
        fp8_format=fp8_format, tk=tk, tn=tn, kp=kp, np=np_,
        weight_q=weight_q, bias_pad=bias_pad,
        input_scale_inv=input_scale_inv,
        out_scale=(input_scale * weight_scale).astype(jnp.float32),  # hoisted s1*s2
    )


def fp8_linear_forward(params, inp):
    """Pallas equivalent of FP8Linear.forward."""
    in_features = params["in_features"]
    out_features = params["out_features"]
    assert inp.shape[-1] == in_features, "GEMM not possible"

    lead_shape = inp.shape[:-1]
    # Keep the activations in their original dtype: the quantize kernel casts to f32
    # per-tile in VMEM, so we never materialize an f32 copy of the input in HBM.
    x2d = inp.reshape(-1, in_features)
    m_dim = x2d.shape[0]
    tk, tn, kp, np_ = params["tk"], params["tn"], params["kp"], params["np"]
    tm = _tile(m_dim, _TM, 16)                    # multiple of 16: bf16 sublane packing
    mp = _round_up(m_dim, tm)

    x_pad = jnp.pad(x2d, ((0, mp - m_dim), (0, kp - in_features)))
    # quantize once (cast_to_fp8_v2 of the activations)
    x_q = _quantize_to_fp8_bf16(x_pad, params["input_scale_inv"], (tm, tk),
                                params["fp8_format"])
    # fp8_gemm_v2 with fused dequant scale + bias
    out_pad = _fp8_gemm(x_q, params["weight_q"], params["bias_pad"],
                        params["out_scale"], tm, tn, tk, params["out_dtype"])
    out = out_pad[:m_dim, :out_features]
    return out.reshape(*lead_shape, out_features)


if __name__ == "__main__":
    key = jax.random.PRNGKey(0)
    k1, k2, k3 = jax.random.split(key, 3)
    batch, seq, in_features, out_features = 2, 8, 32, 16

    inp = jax.random.normal(k1, (batch, seq, in_features), dtype=jnp.float32)
    weight = jax.random.normal(k2, (out_features, in_features), dtype=jnp.float32) * 0.1
    bias = jax.random.normal(k3, (out_features,), dtype=jnp.float32) * 0.1

    params = fp8_linear_from_float(weight, bias, calib_input=inp, fp8_format="e4m3")
    out = fp8_linear_forward(params, inp)
    out = jax.block_until_ready(out)

    # sanity: per-tensor fp8 quantization keeps the linear close to the f32 reference
    ref = inp @ weight.T + bias
    assert out.shape == (batch, seq, out_features) and out.dtype == jnp.float32
    rel_err = float(jnp.max(jnp.abs(out - ref)) / (jnp.max(jnp.abs(ref)) + 1e-6))
    assert rel_err < 0.15, f"unexpected fp8 quantization error: {rel_err}"
    print("KERNEL_OK")
</pallas_src>

<mosaic_0001>
module attributes {stable_mosaic.version = 11 : i64} {
  func.func @_amax_kernel(%arg0: i32, %arg1: i32, %arg2: memref<32x128xf32, #tpu.memory_space<vmem>>, %arg3: memref<1x1xf32, #tpu.memory_space<vmem>>, %arg4: memref<1x1xf32, #tpu.memory_space<vmem>>) attributes {dimension_semantics = [#tpu.dimension_semantics<arbitrary>, #tpu.dimension_semantics<arbitrary>], iteration_bounds = array<i64: 1, 1>, scalar_prefetch = 0 : i64, scratch_operands = 1 : i64, tpu.core_type = #tpu.core_type<tc>, window_params = [{transform_indices = @transform_0, window_bounds = array<i64: 32, 128>}, {pipeline_mode = #tpu.pipeline_mode<synchronous>, transform_indices = @transform_1, window_bounds = array<i64: 1, 1>}]} {
    %c0_i32 = arith.constant 0 : i32
    %0 = arith.cmpi eq, %arg0, %c0_i32 : i32
    %c0_i32_0 = arith.constant 0 : i32
    %1 = arith.cmpi eq, %arg1, %c0_i32_0 : i32
    %2 = arith.andi %0, %1 : i1
    %3 = arith.extui %2 : i1 to i32
    %c0_i32_1 = arith.constant 0 : i32
    %4 = arith.cmpi ne, %3, %c0_i32_1 : i32
    scf.if %4 {
      %cst_11 = arith.constant 0.000000e+00 : f32
      %19 = vector.broadcast %cst_11 : f32 to vector<1x1xf32>
      %c0_12 = arith.constant 0 : index
      %c0_13 = arith.constant 0 : index
      %20 = vector.load %arg4[%c0_12, %c0_13] : memref<1x1xf32, #tpu.memory_space<vmem>>, vector<1x1xf32>
      tpu.vector_store %arg4[%c0_12, %c0_13], %19 {strides = array<i32>} : memref<1x1xf32, #tpu.memory_space<vmem>>, vector<1x1xf32>,
    } else {
    }
    %c0 = arith.constant 0 : index
    %c0_2 = arith.constant 0 : index
    %5 = vector.load %arg2[%c0, %c0_2] : memref<32x128xf32, #tpu.memory_space<vmem>>, vector<32x128xf32>
    %6 = math.absf %5 : vector<32x128xf32>
    %cst = arith.constant dense<0xFF800000> : vector<32xf32>
    %7 = vector.multi_reduction <maximumf>, %6, %cst [1] : vector<32x128xf32> to vector<32xf32>
    %8 = vector.shape_cast %7 : vector<32xf32> to vector<32x1xf32>
    %cst_3 = arith.constant dense<0xFF800000> : vector<1xf32>
    %9 = vector.multi_reduction <maximumf>, %8, %cst_3 [0] : vector<32x1xf32> to vector<1xf32>
    %10 = vector.shape_cast %9 : vector<1xf32> to vector<1x1xf32>
    %c0_4 = arith.constant 0 : index
    %c0_5 = arith.constant 0 : index
    %11 = vector.load %arg4[%c0_4, %c0_5] : memref<1x1xf32, #tpu.memory_space<vmem>>, vector<1x1xf32>
    %12 = arith.maximumf %11, %10 : vector<1x1xf32>
    %c0_6 = arith.constant 0 : index
    %c0_7 = arith.constant 0 : index
    %13 = vector.load %arg4[%c0_6, %c0_7] : memref<1x1xf32, #tpu.memory_space<vmem>>, vector<1x1xf32>
    tpu.vector_store %arg4[%c0_6, %c0_7], %12 {strides = array<i32>} : memref<1x1xf32, #tpu.memory_space<vmem>>, vector<1x1xf32>,
    %c0_i32_8 = arith.constant 0 : i32
    %14 = arith.cmpi eq, %arg0, %c0_i32_8 : i32
    %c0_i32_9 = arith.constant 0 : i32
    %15 = arith.cmpi eq, %arg1, %c0_i32_9 : i32
    %16 = arith.andi %14, %15 : i1
    %17 = arith.extui %16 : i1 to i32
    %c0_i32_10 = arith.constant 0 : i32
    %18 = arith.cmpi ne, %17, %c0_i32_10 : i32
    scf.if %18 {
      %c0_11 = arith.constant 0 : index
      %c0_12 = arith.constant 0 : index
      %19 = vector.load %arg4[%c0_11, %c0_12] : memref<1x1xf32, #tpu.memory_space<vmem>>, vector<1x1xf32>
      %c0_13 = arith.constant 0 : index
      %c0_14 = arith.constant 0 : index
      %20 = vector.load %arg3[%c0_13, %c0_14] : memref<1x1xf32, #tpu.memory_space<vmem>>, vector<1x1xf32>
      tpu.vector_store %arg3[%c0_13, %c0_14], %19 {strides = array<i32>} : memref<1x1xf32, #tpu.memory_space<vmem>>, vector<1x1xf32>,
    } else {
    }
    return
  }
  func.func @transform_0(%arg0: i32, %arg1: i32) -> (i32, i32) {
    %c0_i32 = arith.constant 0 : i32
    return %arg0, %arg1 : i32, i32
  }
  func.func @transform_1(%arg0: i32, %arg1: i32) -> (i32, i32) {
    %c0_i32 = arith.constant 0 : i32
    %c0_i32_0 = arith.constant 0 : i32
    %c0_i32_1 = arith.constant 0 : i32
    return %c0_i32, %c0_i32_0 : i32, i32
  }
}

</mosaic_0001>

<llo_original>
// kernel: tpu_custom_call.1
$region0: #{tpu_custom_call.1}
  #allocation0 [shape = 'u32[]', space=smem, size = 0x4, offset = 0x4, fixed_abs, tag = 'smem constant byte address 0x4 - core index']
  #allocation1 [shape = 'u32[144,128]{1,0:T(1,128)}', space=vmem, size = 0x12000, scoped, tag = 'internal scratch']
  #allocation2 [shape = 'f32[1,1]{1,0:T(1,128)}', space=vmem, size = 0x200, scoped, tag = 'scratch operand']
  %s0 = inlined_call_operand.hbm [shape: f32[32,128], index: 0, kind: input, shape index: {}]
  %s1 = inlined_call_operand.hbm [shape: f32[1,1], index: 1, kind: output, shape index: {}]
  %s2 = sld [smem:[#allocation0]]
  $region26: #{tpu_custom_call.1} parent=0
    _
  %s4 = ssub.s32 1, %s2
  %s5 = scalar_select 0, %s4, %s2
  $region1: #{tpu_custom_call.1} parent=0
    #allocation3 [shape = 'u8[16384]{0}', space=vmem, size = 0x4000, scoped, tag = 'input window, operand 0, single buffered']
    #allocation4 [shape = 's32[1]{0}', space=sflag, size = 0x4, scoped, tag = 'scoped memory for tpu_custom_call.1']
    #allocation5 [shape = 's32[1]{0}', space=sflag, size = 0x4, scoped, tag = 'scoped memory for tpu_custom_call.1']
    #allocation6 [shape = 'u8[512]{0}', space=vmem, size = 0x400, scoped, tag = 'output window, operand 0, single buffered']
    %6 = vsyncpa [#allocation4], 0
    %7 = vsyncpa [#allocation5], 0
    // Predicated region
    $region2: #{tpu_custom_call.1} parent=1 // pred_check
      _
    $region3: #{tpu_custom_call.1} parent=1 // pred_check_branch
      %9 = sbr.rel (0) target = $region5
    $region4: #{tpu_custom_call.1} parent=1 // pred_region
      %s11 = ssub.s32 512, 512
      %12 = vsyncadd [#allocation4], %s11
      %s13 = sshll.u32 [#allocation3], 4
      %s14 = int_to_ptr.vmem [resolvable:$true] %s13
      %19 = dma.hbm_to_vmem [thread:$0]  %s0, 512, %s14, [#allocation4], 128, 128, 8
    $region5: #{tpu_custom_call.1} parent=1 // pred_fallthru
      _
    // Predicated region
    $region6: #{tpu_custom_call.1} parent=1 // pred_check
      _
    $region7: #{tpu_custom_call.1} parent=1 // pred_check_branch
      %21 = sbr.rel (0) target = $region9
    $region8: #{tpu_custom_call.1} parent=1 // pred_region
      %22 = dma.done [#allocation4], 512
    $region9: #{tpu_custom_call.1} parent=1 // pred_fallthru
      _
    %p23 = scmp.eq.s32.totalorder 0, 0
    %p24 = scmp.eq.s32.totalorder 0, 0
    %p25 = pnand %p23, %p24
    %p26 = pneg %p25
    // Predicated region
    $region10: #{tpu_custom_call.1} parent=1 // pred_check
      _
    $region11: #{tpu_custom_call.1} parent=1 // pred_check_branch
      %28 = sbr.rel (%p25) target = $region13
    $region12: #{tpu_custom_call.1} parent=1 // pred_region
      %vm29 = vcmask 0
      %30 = vst.msk [vmem:[#allocation2] sm:$0x1] %vm29, 0.0
    $region13: #{tpu_custom_call.1} parent=1 // pred_fallthru
      _
    %v31 = vld [vmem:[#allocation3] sm:$0xff]
    %v32 = vld [vmem:[#allocation3 + $0x8] sm:$0xff]
    %v33 = vld [vmem:[#allocation3 + $0x10] sm:$0xff]
    %v34 = vld [vmem:[#allocation3 + $0x18] sm:$0xff]
    %v35 = vand.u32 2147483647, %v31
    %v36 = vand.u32 2147483647, %v32
    %v37 = vand.u32 2147483647, %v33
    %v38 = vand.u32 2147483647, %v34
    %39 = vmax.xlane.f32.xlu0 %v35
    %v40 = vpop.xlane.xlu0 %39
    %41 = vmax.xlane.f32.xlu0 %v36
    %v42 = vpop.xlane.xlu0 %41
    %43 = vmax.xlane.f32.xlu0 %v37
    %v44 = vpop.xlane.xlu0 %43
    %45 = vmax.xlane.f32.xlu0 %v38
    %v46 = vpop.xlane.xlu0 %45
    %v47 = vmax.f32 %v40, %v42
    %v48 = vmax.f32 %v44, %v46
    %v49 = vmax.f32 %v47, %v48
    %v50 = vrot.slane %v49, 4
    %v51 = vmax.f32 %v49, %v50
    %v52 = vrot.slane %v51, 2
    %v53 = vmax.f32 %v51, %v52
    %v54 = vrot.slane %v53, 1
    %v55 = vmax.f32 %v53, %v54
    %v56 = vld [vmem:[#allocation2] sm:$0x1]
    %v57 = vmax.f32 %v56, %v55
    %vm58 = vcmask 0
    %59 = vst.msk [vmem:[#allocation2] sm:$0x1] %vm58, %v57
    // Predicated region
    $region14: #{tpu_custom_call.1} parent=1 // pred_check
      _
    $region15: #{tpu_custom_call.1} parent=1 // pred_check_branch
      %61 = sbr.rel (%p25) target = $region17
    $region16: #{tpu_custom_call.1} parent=1 // pred_region
      %v62 = vld [vmem:[#allocation2] sm:$0x1]
      %63 = vst.msk [vmem:[#allocation6] sm:$0x1] %vm58, %v62
    $region17: #{tpu_custom_call.1} parent=1 // pred_fallthru
      _
    // Predicated region
    $region18: #{tpu_custom_call.1} parent=1 // pred_check
      _
    $region19: #{tpu_custom_call.1} parent=1 // pred_check_branch
      %65 = sbr.rel (0) target = $region21
    $region20: #{tpu_custom_call.1} parent=1 // pred_region
      %s67 = ssub.s32 16, 16
      %68 = vsyncadd [#allocation5], %s67
      %s70 = sshll.u32 [#allocation6], 4
      %s71 = int_to_ptr.vmem [resolvable:$true] %s70
      %73 = dma.vmem_to_hbm [thread:$0]  %s71, 16, %s1, [#allocation5]
    $region21: #{tpu_custom_call.1} parent=1 // pred_fallthru
      _
    // Predicated region
    $region22: #{tpu_custom_call.1} parent=1 // pred_check
      _
    $region23: #{tpu_custom_call.1} parent=1 // pred_check_branch
      %75 = sbr.rel (0) target = $region25
    $region24: #{tpu_custom_call.1} parent=1 // pred_region
      %76 = dma.done [#allocation5], 16
    $region25: #{tpu_custom_call.1} parent=1 // pred_fallthru
      _
    %77 = vsyncpa [#allocation4], 1
    %78 = vsyncpa [#allocation5], 1

</llo_original>
